<compile_context>
chip_gen: v5e
topology: v5e:2x2
jax: 0.10.0
libtpu: 0.0.40
codegen_flags: <defaults>
</compile_context>

<pallas_src>
import functools

import jax
import jax.numpy as jnp
import numpy as np
from jax.experimental import pallas as pl
from jax.experimental.pallas import tpu as pltpu

KERNEL_SIZE = 7
PAD = 3
HALO = 8          # KERNEL_SIZE - 1 rounded up to the sublane granule (8)
C_PAD = 128       # lane-dense padded class width


def _round_up(x, m):
    return ((x + m - 1) // m) * m


def _choose_row_tile(seq_len, t_dim, vmem_budget=12 * 1024 * 1024):
    """Largest row tile (multiple of 8, <= 1024) whose working set fits VMEM."""
    ts = min(1024, _round_up(max(seq_len, 8), 8))

    def block_bytes(rt):
        return (2 * (rt + HALO) * t_dim * 2          # double-buffered bf16 window
                + 2 * rt * C_PAD * 2                 # double-buffered bf16 out tile
                + 2 * KERNEL_SIZE * t_dim * t_dim * 2  # conv weights
                + 2 * t_dim * C_PAD * 2              # classifier weight
                + 2 * (t_dim + C_PAD) * 4            # biases
                + rt * t_dim * 4)                    # f32 accumulator headroom

    while ts > 8 and block_bytes(ts) > vmem_budget:
        ts = max(8, _round_up(ts // 2, 8))
    return ts


def _cnn_head_kernel(xw_ref, wtap_ref, bconv_ref, wcls_ref, bcls_ref, out_ref):
    """One row tile (plus its 8-row halo) of one batch element per grid step.

    xw_ref   : (ts + 8, T) bf16   padded rows [tile_start, tile_start + ts + 8)
    wtap_ref : (7, T, T)   bf16   conv weight laid out as w[k, c_in, c_out]
    bconv_ref: (1, T)      f32    conv bias
    wcls_ref : (T, 128)    bf16   classifier weight (transposed, zero-padded)
    bcls_ref : (1, 128)    f32    classifier bias (zero-padded)
    out_ref  : (ts, 128)   bf16   logits tile (lane-dense, zero-padded classes)
    """
    ts = out_ref.shape[0]
    t_dim = bconv_ref.shape[1]

    xw = xw_ref[...]                                   # one aligned bf16 load

    # Conv1d: 7 taps as chained MXU matmuls over the full window; each f32
    # result is shift-accumulated (rows [k, k+ts)) into an accumulator that
    # starts as the broadcast bias.
    acc = jnp.broadcast_to(bconv_ref[...], (ts, t_dim))
    for k in range(KERNEL_SIZE):
        y = jnp.dot(xw, wtap_ref[k], preferred_element_type=jnp.float32)
        acc = acc + y[k:k + ts, :]

    # ReLU in f32 (dropout == identity at inference).
    h = jnp.maximum(acc, 0.0)

    # Linear(T -> 128 padded classes): bf16 operands, f32 accumulation,
    # lane-dense bf16 store.
    logits = jnp.dot(h.astype(wcls_ref.dtype), wcls_ref[...],
                     preferred_element_type=jnp.float32)
    out_ref[...] = (logits + bcls_ref[...]).astype(out_ref.dtype)


@functools.partial(jax.jit, static_argnames=("num_classes",))
def cnn_classifier_head(x, w_conv, b_conv, w_cls, b_cls, *, num_classes):
    """x: (B, S, T) float32. Returns (B, S, num_classes) float32."""
    B, S, T = x.shape
    C = num_classes

    ts = _choose_row_tile(S, T)
    num_tiles = (S + ts - 1) // ts
    s_pad = num_tiles * ts
    num_blocks = B * num_tiles

    # ---- Single wrapper pass over activations: pad + bf16 + halo windows ---
    # Per-batch zero padding (PAD in front, enough in back for the last tile's
    # halo) so conv taps never leak across batch boundaries.
    xp = jnp.pad(x, ((0, 0), (PAD, s_pad - S + HALO - PAD), (0, 0)))
    xp = xp.astype(jnp.bfloat16)                       # (B, s_pad + HALO, T)
    # Window i holds padded rows [i*ts, i*ts + ts + HALO) — only 8 rows of
    # duplication per tile (vs 7x for im2col).
    x_win = jnp.stack(
        [xp[:, i * ts:i * ts + ts + HALO, :] for i in range(num_tiles)],
        axis=1).reshape(num_blocks, ts + HALO, T)

    # ---- Weight re-layout (tiny, one-off) ----------------------------------
    # torch Conv1d weight (c_out, c_in, k) -> (k, c_in, c_out).
    w_taps = jnp.transpose(w_conv, (2, 1, 0)).astype(jnp.bfloat16)   # (7, T, T)
    b_conv2 = b_conv.reshape(1, T).astype(jnp.float32)
    # torch Linear weight (C, T) -> (T, C) -> zero-pad classes to 128 lanes.
    w_cls_p = jnp.zeros((T, C_PAD), jnp.bfloat16).at[:, :C].set(
        jnp.transpose(w_cls).astype(jnp.bfloat16))
    b_cls_p = jnp.zeros((1, C_PAD), jnp.float32).at[0, :C].set(
        b_cls.astype(jnp.float32))

    flops = 2 * num_blocks * ((ts + HALO) * KERNEL_SIZE * T * T + ts * T * C_PAD)
    bytes_accessed = (x_win.size * 2 + w_taps.size * 2 + w_cls_p.size * 2
                      + (T + C_PAD) * 4 + num_blocks * ts * C_PAD * 2)

    out_flat = pl.pallas_call(
        _cnn_head_kernel,
        out_shape=jax.ShapeDtypeStruct((num_blocks * ts, C_PAD), jnp.bfloat16),
        grid=(num_blocks,),
        in_specs=[
            pl.BlockSpec((None, ts + HALO, T), lambda i: (i, 0, 0)),
            pl.BlockSpec((KERNEL_SIZE, T, T), lambda i: (0, 0, 0)),
            pl.BlockSpec((1, T), lambda i: (0, 0)),
            pl.BlockSpec((T, C_PAD), lambda i: (0, 0)),
            pl.BlockSpec((1, C_PAD), lambda i: (0, 0)),
        ],
        out_specs=pl.BlockSpec((ts, C_PAD), lambda i: (i, 0)),
        compiler_params=pltpu.CompilerParams(
            dimension_semantics=("parallel",)),
        cost_estimate=pl.CostEstimate(
            flops=flops, transcendentals=0, bytes_accessed=bytes_accessed),
    )(x_win, w_taps, b_conv2, w_cls_p, b_cls_p)

    # Un-pad: (B*s_pad, 128) -> (B, S, C), f32 like the PyTorch module.
    return out_flat.reshape(B, s_pad, C_PAD)[:, :S, :C].astype(jnp.float32)


def reference_forward(x, w_conv, b_conv, w_cls, b_cls):
    """Pure-JAX f32 reference mirroring the PyTorch module (eval mode)."""
    B, S, T = x.shape
    xp = jnp.pad(x, ((0, 0), (PAD, PAD), (0, 0)))
    conv = jnp.zeros((B, S, T), jnp.float32) + b_conv[None, None, :]
    for k in range(KERNEL_SIZE):
        # out[b,s,c_out] += sum_{c_in} xp[b, s+k, c_in] * w_conv[c_out, c_in, k]
        conv += jnp.einsum("bsi,oi->bso", xp[:, k:k + S, :], w_conv[:, :, k])
    h = jax.nn.relu(conv)
    return jnp.einsum("bst,ct->bsc", h, w_cls) + b_cls[None, None, :]


if __name__ == "__main__":
    # Small shapes consistent with the module: time_dim=32 (conv channels),
    # seq=16, batch=2, num_classes=8.
    B, S, TIME_DIM, NUM_CLASSES = 2, 16, 32, 8

    key = jax.random.PRNGKey(0)
    k_x, k_wc, k_bc, k_wl, k_bl = jax.random.split(key, 5)

    # Deterministic parameter init (PyTorch-style uniform bounds).
    conv_bound = 1.0 / np.sqrt(TIME_DIM * KERNEL_SIZE)
    lin_bound = 1.0 / np.sqrt(TIME_DIM)
    w_conv = jax.random.uniform(
        k_wc, (TIME_DIM, TIME_DIM, KERNEL_SIZE), jnp.float32,
        -conv_bound, conv_bound)
    b_conv = jax.random.uniform(
        k_bc, (TIME_DIM,), jnp.float32, -conv_bound, conv_bound)
    w_cls = jax.random.uniform(
        k_wl, (NUM_CLASSES, TIME_DIM), jnp.float32, -lin_bound, lin_bound)
    b_cls = jax.random.uniform(
        k_bl, (NUM_CLASSES,), jnp.float32, -lin_bound, lin_bound)

    x = jax.random.normal(k_x, (B, S, TIME_DIM), jnp.float32)

    out = cnn_classifier_head(
        x, w_conv, b_conv, w_cls, b_cls, num_classes=NUM_CLASSES)
    out = jax.block_until_ready(out)

    ref = jax.block_until_ready(
        reference_forward(x, w_conv, b_conv, w_cls, b_cls))

    assert out.shape == (B, S, NUM_CLASSES), out.shape
    # Operands (and the final store) are bf16; accumulation stays f32.
    np.testing.assert_allclose(np.asarray(out), np.asarray(ref),
                               rtol=2e-2, atol=2e-2)
    print("KERNEL_OK")
</pallas_src>

<mosaic_0001>
module attributes {stable_mosaic.version = 11 : i64} {
  func.func @_cnn_head_kernel(%arg0: i32, %arg1: memref<1x24x32xbf16, #tpu.memory_space<vmem>>, %arg2: memref<7x32x32xbf16, #tpu.memory_space<vmem>>, %arg3: memref<1x32xf32, #tpu.memory_space<vmem>>, %arg4: memref<32x128xbf16, #tpu.memory_space<vmem>>, %arg5: memref<1x128xf32, #tpu.memory_space<vmem>>, %arg6: memref<16x128xbf16, #tpu.memory_space<vmem>>) attributes {dimension_semantics = [#tpu.dimension_semantics<parallel>], iteration_bounds = array<i64: 2>, scalar_prefetch = 0 : i64, scratch_operands = 0 : i64, tpu.core_type = #tpu.core_type<tc>, window_params = [{transform_indices = @transform_0, window_bounds = array<i64: 1, 24, 32>}, {pipeline_mode = #tpu.pipeline_mode<synchronous>, transform_indices = @transform_1, window_bounds = array<i64: 7, 32, 32>}, {pipeline_mode = #tpu.pipeline_mode<synchronous>, transform_indices = @transform_2, window_bounds = array<i64: 1, 32>}, {pipeline_mode = #tpu.pipeline_mode<synchronous>, transform_indices = @transform_3, window_bounds = array<i64: 32, 128>}, {pipeline_mode = #tpu.pipeline_mode<synchronous>, transform_indices = @transform_4, window_bounds = array<i64: 1, 128>}, {transform_indices = @transform_5, window_bounds = array<i64: 16, 128>}]} {
    %c0 = arith.constant 0 : index
    %c0_0 = arith.constant 0 : index
    %c0_1 = arith.constant 0 : index
    %0 = vector.load %arg1[%c0, %c0_0, %c0_1] : memref<1x24x32xbf16, #tpu.memory_space<vmem>>, vector<1x24x32xbf16>
    %1 = vector.shape_cast %0 : vector<1x24x32xbf16> to vector<24x32xbf16>
    %c0_2 = arith.constant 0 : index
    %c0_3 = arith.constant 0 : index
    %2 = vector.load %arg3[%c0_2, %c0_3] : memref<1x32xf32, #tpu.memory_space<vmem>>, vector<1x32xf32>
    %3 = vector.shape_cast %2 : vector<1x32xf32> to vector<1x32xf32>
    %4 = vector.broadcast %3 : vector<1x32xf32> to vector<16x32xf32>
    %c0_4 = arith.constant 0 : index
    %c0_5 = arith.constant 0 : index
    %c0_6 = arith.constant 0 : index
    %5 = vector.load %arg2[%c0_4, %c0_5, %c0_6] : memref<7x32x32xbf16, #tpu.memory_space<vmem>>, vector<1x32x32xbf16>
    %6 = vector.shape_cast %5 : vector<1x32x32xbf16> to vector<32x32xbf16>
    %cst = arith.constant dense<0.000000e+00> : vector<24x32xf32>
    %7 = tpu.matmul %1, %6, %cst {dimension_numbers = #tpu.dot_dimension_numbers<[1], [0], [0], [1], [0, 0, 1, 1], [], []>} : vector<24x32xbf16>, vector<32x32xbf16>, vector<24x32xf32> -> vector<24x32xf32>
    %8 = vector.extract_strided_slice %7 {offsets = [0, 0], sizes = [16, 32], strides = [1, 1]} : vector<24x32xf32> to vector<16x32xf32>
    %9 = arith.addf %4, %8 : vector<16x32xf32>
    %c1 = arith.constant 1 : index
    %c0_7 = arith.constant 0 : index
    %c0_8 = arith.constant 0 : index
    %10 = vector.load %arg2[%c1, %c0_7, %c0_8] : memref<7x32x32xbf16, #tpu.memory_space<vmem>>, vector<1x32x32xbf16>
    %11 = vector.shape_cast %10 : vector<1x32x32xbf16> to vector<32x32xbf16>
    %cst_9 = arith.constant dense<0.000000e+00> : vector<24x32xf32>
    %12 = tpu.matmul %1, %11, %cst_9 {dimension_numbers = #tpu.dot_dimension_numbers<[1], [0], [0], [1], [0, 0, 1, 1], [], []>} : vector<24x32xbf16>, vector<32x32xbf16>, vector<24x32xf32> -> vector<24x32xf32>
    %13 = vector.extract_strided_slice %12 {offsets = [1, 0], sizes = [16, 32], strides = [1, 1]} : vector<24x32xf32> to vector<16x32xf32>
    %14 = arith.addf %9, %13 : vector<16x32xf32>
    %c2 = arith.constant 2 : index
    %c0_10 = arith.constant 0 : index
    %c0_11 = arith.constant 0 : index
    %15 = vector.load %arg2[%c2, %c0_10, %c0_11] : memref<7x32x32xbf16, #tpu.memory_space<vmem>>, vector<1x32x32xbf16>
    %16 = vector.shape_cast %15 : vector<1x32x32xbf16> to vector<32x32xbf16>
    %cst_12 = arith.constant dense<0.000000e+00> : vector<24x32xf32>
    %17 = tpu.matmul %1, %16, %cst_12 {dimension_numbers = #tpu.dot_dimension_numbers<[1], [0], [0], [1], [0, 0, 1, 1], [], []>} : vector<24x32xbf16>, vector<32x32xbf16>, vector<24x32xf32> -> vector<24x32xf32>
    %18 = vector.extract_strided_slice %17 {offsets = [2, 0], sizes = [16, 32], strides = [1, 1]} : vector<24x32xf32> to vector<16x32xf32>
    %19 = arith.addf %14, %18 : vector<16x32xf32>
    %c3 = arith.constant 3 : index
    %c0_13 = arith.constant 0 : index
    %c0_14 = arith.constant 0 : index
    %20 = vector.load %arg2[%c3, %c0_13, %c0_14] : memref<7x32x32xbf16, #tpu.memory_space<vmem>>, vector<1x32x32xbf16>
    %21 = vector.shape_cast %20 : vector<1x32x32xbf16> to vector<32x32xbf16>
    %cst_15 = arith.constant dense<0.000000e+00> : vector<24x32xf32>
    %22 = tpu.matmul %1, %21, %cst_15 {dimension_numbers = #tpu.dot_dimension_numbers<[1], [0], [0], [1], [0, 0, 1, 1], [], []>} : vector<24x32xbf16>, vector<32x32xbf16>, vector<24x32xf32> -> vector<24x32xf32>
    %23 = vector.extract_strided_slice %22 {offsets = [3, 0], sizes = [16, 32], strides = [1, 1]} : vector<24x32xf32> to vector<16x32xf32>
    %24 = arith.addf %19, %23 : vector<16x32xf32>
    %c4 = arith.constant 4 : index
    %c0_16 = arith.constant 0 : index
    %c0_17 = arith.constant 0 : index
    %25 = vector.load %arg2[%c4, %c0_16, %c0_17] : memref<7x32x32xbf16, #tpu.memory_space<vmem>>, vector<1x32x32xbf16>
    %26 = vector.shape_cast %25 : vector<1x32x32xbf16> to vector<32x32xbf16>
    %cst_18 = arith.constant dense<0.000000e+00> : vector<24x32xf32>
    %27 = tpu.matmul %1, %26, %cst_18 {dimension_numbers = #tpu.dot_dimension_numbers<[1], [0], [0], [1], [0, 0, 1, 1], [], []>} : vector<24x32xbf16>, vector<32x32xbf16>, vector<24x32xf32> -> vector<24x32xf32>
    %28 = vector.extract_strided_slice %27 {offsets = [4, 0], sizes = [16, 32], strides = [1, 1]} : vector<24x32xf32> to vector<16x32xf32>
    %29 = arith.addf %24, %28 : vector<16x32xf32>
    %c5 = arith.constant 5 : index
    %c0_19 = arith.constant 0 : index
    %c0_20 = arith.constant 0 : index
    %30 = vector.load %arg2[%c5, %c0_19, %c0_20] : memref<7x32x32xbf16, #tpu.memory_space<vmem>>, vector<1x32x32xbf16>
    %31 = vector.shape_cast %30 : vector<1x32x32xbf16> to vector<32x32xbf16>
    %cst_21 = arith.constant dense<0.000000e+00> : vector<24x32xf32>
    %32 = tpu.matmul %1, %31, %cst_21 {dimension_numbers = #tpu.dot_dimension_numbers<[1], [0], [0], [1], [0, 0, 1, 1], [], []>} : vector<24x32xbf16>, vector<32x32xbf16>, vector<24x32xf32> -> vector<24x32xf32>
    %33 = vector.extract_strided_slice %32 {offsets = [5, 0], sizes = [16, 32], strides = [1, 1]} : vector<24x32xf32> to vector<16x32xf32>
    %34 = arith.addf %29, %33 : vector<16x32xf32>
    %c6 = arith.constant 6 : index
    %c0_22 = arith.constant 0 : index
    %c0_23 = arith.constant 0 : index
    %35 = vector.load %arg2[%c6, %c0_22, %c0_23] : memref<7x32x32xbf16, #tpu.memory_space<vmem>>, vector<1x32x32xbf16>
    %36 = vector.shape_cast %35 : vector<1x32x32xbf16> to vector<32x32xbf16>
    %cst_24 = arith.constant dense<0.000000e+00> : vector<24x32xf32>
    %37 = tpu.matmul %1, %36, %cst_24 {dimension_numbers = #tpu.dot_dimension_numbers<[1], [0], [0], [1], [0, 0, 1, 1], [], []>} : vector<24x32xbf16>, vector<32x32xbf16>, vector<24x32xf32> -> vector<24x32xf32>
    %38 = vector.extract_strided_slice %37 {offsets = [6, 0], sizes = [16, 32], strides = [1, 1]} : vector<24x32xf32> to vector<16x32xf32>
    %39 = arith.addf %34, %38 : vector<16x32xf32>
    %cst_25 = arith.constant 0.000000e+00 : f32
    %40 = vector.broadcast %cst_25 : f32 to vector<16x32xf32>
    %41 = arith.maximumf %39, %40 : vector<16x32xf32>
    %42 = arith.truncf %41 : vector<16x32xf32> to vector<16x32xbf16>
    %c0_26 = arith.constant 0 : index
    %c0_27 = arith.constant 0 : index
    %43 = vector.load %arg4[%c0_26, %c0_27] : memref<32x128xbf16, #tpu.memory_space<vmem>>, vector<32x128xbf16>
    %cst_28 = arith.constant dense<0.000000e+00> : vector<16x128xf32>
    %44 = tpu.matmul %42, %43, %cst_28 {dimension_numbers = #tpu.dot_dimension_numbers<[1], [0], [0], [1], [0, 0, 1, 1], [], []>} : vector<16x32xbf16>, vector<32x128xbf16>, vector<16x128xf32> -> vector<16x128xf32>
    %c0_29 = arith.constant 0 : index
    %c0_30 = arith.constant 0 : index
    %45 = vector.load %arg5[%c0_29, %c0_30] : memref<1x128xf32, #tpu.memory_space<vmem>>, vector<1x128xf32>
    %46 = vector.broadcast %45 : vector<1x128xf32> to vector<16x128xf32>
    %47 = arith.addf %44, %46 : vector<16x128xf32>
    %48 = arith.truncf %47 : vector<16x128xf32> to vector<16x128xbf16>
    %c0_31 = arith.constant 0 : index
    %c0_32 = arith.constant 0 : index
    %49 = vector.load %arg6[%c0_31, %c0_32] : memref<16x128xbf16, #tpu.memory_space<vmem>>, vector<16x128xbf16>
    tpu.vector_store %arg6[%c0_31, %c0_32], %48 {strides = array<i32>} : memref<16x128xbf16, #tpu.memory_space<vmem>>, vector<16x128xbf16>,
    return
  }
  func.func @transform_0(%arg0: i32) -> (i32, i32, i32) {
    %c0_i32 = arith.constant 0 : i32
    %c0_i32_0 = arith.constant 0 : i32
    %c0_i32_1 = arith.constant 0 : i32
    return %arg0, %c0_i32, %c0_i32_0 : i32, i32, i32
  }
  func.func @transform_1(%arg0: i32) -> (i32, i32, i32) {
    %c0_i32 = arith.constant 0 : i32
    %c0_i32_0 = arith.constant 0 : i32
    %c0_i32_1 = arith.constant 0 : i32
    %c0_i32_2 = arith.constant 0 : i32
    return %c0_i32, %c0_i32_0, %c0_i32_1 : i32, i32, i32
  }
  func.func @transform_2(%arg0: i32) -> (i32, i32) {
    %c0_i32 = arith.constant 0 : i32
    %c0_i32_0 = arith.constant 0 : i32
    %c0_i32_1 = arith.constant 0 : i32
    return %c0_i32, %c0_i32_0 : i32, i32
  }
  func.func @transform_3(%arg0: i32) -> (i32, i32) {
    %c0_i32 = arith.constant 0 : i32
    %c0_i32_0 = arith.constant 0 : i32
    %c0_i32_1 = arith.constant 0 : i32
    return %c0_i32, %c0_i32_0 : i32, i32
  }
  func.func @transform_4(%arg0: i32) -> (i32, i32) {
    %c0_i32 = arith.constant 0 : i32
    %c0_i32_0 = arith.constant 0 : i32
    %c0_i32_1 = arith.constant 0 : i32
    return %c0_i32, %c0_i32_0 : i32, i32
  }
  func.func @transform_5(%arg0: i32) -> (i32, i32) {
    %c0_i32 = arith.constant 0 : i32
    %c0_i32_0 = arith.constant 0 : i32
    return %arg0, %c0_i32 : i32, i32
  }
}

</mosaic_0001>

<llo_original>
// kernel: cnn_classifier_head.1
$region0: #{cnn_classifier_head.1}
  #allocation0 [shape = 'u32[]', space=smem, size = 0x4, offset = 0x4, fixed_abs, tag = 'smem constant byte address 0x4 - core index']
  #allocation1 [shape = 'u32[72,128]{1,0:T(1,128)}', space=vmem, size = 0x9000, scoped, tag = 'internal scratch']
  %s0 = inlined_call_operand.vmem [shape: bf16[2,24,32], index: 0, kind: input, shape index: {}]
  %s1 = inlined_call_operand.vmem [shape: bf16[7,32,32], index: 1, kind: input, shape index: {}]
  %s2 = inlined_call_operand.vmem [shape: f32[1,32], index: 2, kind: input, shape index: {}]
  %s3 = inlined_call_operand.vmem [shape: bf16[32,128], index: 3, kind: input, shape index: {}]
  %s4 = inlined_call_operand.vmem [shape: f32[1,128], index: 4, kind: input, shape index: {}]
  %s5 = inlined_call_operand.vmem [shape: bf16[32,128], index: 5, kind: output, shape index: {}]
  %s6 = sld [smem:[#allocation0]]
  $region53: #{cnn_classifier_head.1} parent=0
    _
  %s8 = ssub.s32 1, %s6
  %s9 = scalar_select 0, %s8, %s6
  loop: start=0, step=1, limit=4
  $region2: #{cnn_classifier_head.1} parent=0 // loop_pre_header
    _
  $region3: #{cnn_classifier_head.1} parent=0 // loop_header
    %s11 = sphi 0, %s15
    %p12 = scmp.ge.s32.totalorder %s11, 4
    %s21 = sphi 0, %s23
    %s24 = sphi 0, %s21
    %s25 = sphi 0, %s24
    %s41 = sphi 0, %s25
    %s45 = sphi 0, %s45
    %s47 = sphi 0, %s45
    %s48 = sphi 0, %s47
    %s62 = sphi 0, %s48
    %s66 = sphi 0, %s66
    %s68 = sphi 0, %s66
    %s69 = sphi 0, %s68
    %s83 = sphi 0, %s69
    %s87 = sphi 0, %s87
    %s89 = sphi 0, %s87
    %s90 = sphi 0, %s89
    %s104 = sphi 0, %s90
    %s108 = sphi 0, %s108
    %s110 = sphi 0, %s108
    %s111 = sphi 0, %s110
    %s125 = sphi 0, %s111
    %s131 = sphi 0, %s133
    %s134 = sphi 0, %s131
    %s135 = sphi 0, %s134
    %s151 = sphi 0, %s135
  $region4: #{cnn_classifier_head.1} parent=0 // loop_header_branch
    %14 = sbr.rel (%p12) target = $region8
  $region5: #{cnn_classifier_head.1} parent=0 // loop_body
    %s16 = ssub.s32 %s11, 1
    %s17 = ssub.s32 %s11, 2
    %s18 = sadd.s32 %s11, 1
    %s19 = ssub.s32 %s11, %s18
    %p20 = scmp.eq.s32.totalorder %s19, 0
    %s22 = sadd.s32 %s21, 1
    %s23 = scalar_select %p20, %s21, %s22
    %p26 = pneg %p20
    %p27 = scmp.eq.s32.totalorder %s11, 1
    %p28 = por %p26, %p27
    %p29 = scmp.ne.s32.totalorder %s21, %s24
    %p30 = scmp.eq.s32.totalorder %s11, 0
    %p31 = por %p29, %p30
    %p32 = scmp.ne.s32.totalorder %s21, %s24
    %p33 = scmp.eq.s32.totalorder %s16, 1
    %p34 = por %p32, %p33
    %p35 = scmp.ne.s32.totalorder %s24, %s25
    %p36 = scmp.eq.s32.totalorder %s16, 0
    %p37 = por %p35, %p36
    %p38 = scmp.ne.s32.totalorder %s24, %s25
    %p39 = scmp.eq.s32.totalorder %s17, 1
    %p40 = por %p38, %p39
    %p42 = scmp.ne.s32.totalorder %s25, %s41
    %p43 = scmp.eq.s32.totalorder %s17, 0
    %p44 = por %p42, %p43
    %s46 = sadd.s32 %s45, 1
    %p49 = scmp.eq.s32.totalorder %s11, 1
    %p50 = scmp.ne.s32.totalorder %s45, %s47
    %p51 = scmp.eq.s32.totalorder %s11, 0
    %p52 = por %p50, %p51
    %p53 = scmp.ne.s32.totalorder %s45, %s47
    %p54 = scmp.eq.s32.totalorder %s16, 1
    %p55 = por %p53, %p54
    %p56 = scmp.ne.s32.totalorder %s47, %s48
    %p57 = scmp.eq.s32.totalorder %s16, 0
    %p58 = por %p56, %p57
    %p59 = scmp.ne.s32.totalorder %s47, %s48
    %p60 = scmp.eq.s32.totalorder %s17, 1
    %p61 = por %p59, %p60
    %p63 = scmp.ne.s32.totalorder %s48, %s62
    %p64 = scmp.eq.s32.totalorder %s17, 0
    %p65 = por %p63, %p64
    %s67 = sadd.s32 %s66, 1
    %p70 = scmp.eq.s32.totalorder %s11, 1
    %p71 = scmp.ne.s32.totalorder %s66, %s68
    %p72 = scmp.eq.s32.totalorder %s11, 0
    %p73 = por %p71, %p72
    %p74 = scmp.ne.s32.totalorder %s66, %s68
    %p75 = scmp.eq.s32.totalorder %s16, 1
    %p76 = por %p74, %p75
    %p77 = scmp.ne.s32.totalorder %s68, %s69
    %p78 = scmp.eq.s32.totalorder %s16, 0
    %p79 = por %p77, %p78
    %p80 = scmp.ne.s32.totalorder %s68, %s69
    %p81 = scmp.eq.s32.totalorder %s17, 1
    %p82 = por %p80, %p81
    %p84 = scmp.ne.s32.totalorder %s69, %s83
    %p85 = scmp.eq.s32.totalorder %s17, 0
    %p86 = por %p84, %p85
    %s88 = sadd.s32 %s87, 1
    %p91 = scmp.eq.s32.totalorder %s11, 1
    %p92 = scmp.ne.s32.totalorder %s87, %s89
    %p93 = scmp.eq.s32.totalorder %s11, 0
    %p94 = por %p92, %p93
    %p95 = scmp.ne.s32.totalorder %s87, %s89
    %p96 = scmp.eq.s32.totalorder %s16, 1
    %p97 = por %p95, %p96
    %p98 = scmp.ne.s32.totalorder %s89, %s90
    %p99 = scmp.eq.s32.totalorder %s16, 0
    %p100 = por %p98, %p99
    %p101 = scmp.ne.s32.totalorder %s89, %s90
    %p102 = scmp.eq.s32.totalorder %s17, 1
    %p103 = por %p101, %p102
    %p105 = scmp.ne.s32.totalorder %s90, %s104
    %p106 = scmp.eq.s32.totalorder %s17, 0
    %p107 = por %p105, %p106
    %s109 = sadd.s32 %s108, 1
    %p112 = scmp.eq.s32.totalorder %s11, 1
    %p113 = scmp.ne.s32.totalorder %s108, %s110
    %p114 = scmp.eq.s32.totalorder %s11, 0
    %p115 = por %p113, %p114
    %p116 = scmp.ne.s32.totalorder %s108, %s110
    %p117 = scmp.eq.s32.totalorder %s16, 1
    %p118 = por %p116, %p117
    %p119 = scmp.ne.s32.totalorder %s110, %s111
    %p120 = scmp.eq.s32.totalorder %s16, 0
    %p121 = por %p119, %p120
    %p122 = scmp.ne.s32.totalorder %s110, %s111
    %p123 = scmp.eq.s32.totalorder %s17, 1
    %p124 = por %p122, %p123
    %p126 = scmp.ne.s32.totalorder %s111, %s125
    %p127 = scmp.eq.s32.totalorder %s17, 0
    %p128 = por %p126, %p127
    %s129 = ssub.s32 %s11, %s18
    %p130 = scmp.eq.s32.totalorder %s129, 0
    %s132 = sadd.s32 %s131, 1
    %s133 = scalar_select %p130, %s131, %s132
    %p136 = pneg %p130
    %p137 = scmp.eq.s32.totalorder %s11, 1
    %p138 = por %p136, %p137
    %p139 = scmp.ne.s32.totalorder %s131, %s134
    %p140 = scmp.eq.s32.totalorder %s11, 0
    %p141 = por %p139, %p140
    %p142 = scmp.ne.s32.totalorder %s131, %s134
    %p143 = scmp.eq.s32.totalorder %s16, 1
    %p144 = por %p142, %p143
    %p145 = scmp.ne.s32.totalorder %s134, %s135
    %p146 = scmp.eq.s32.totalorder %s16, 0
    %p147 = por %p145, %p146
    %p148 = scmp.ne.s32.totalorder %s134, %s135
    %p149 = scmp.eq.s32.totalorder %s17, 1
    %p150 = por %p148, %p149
    %p152 = scmp.ne.s32.totalorder %s135, %s151
    %p153 = scmp.eq.s32.totalorder %s17, 0
    %p154 = por %p152, %p153
    %p155 = scmp.le.s32.totalorder 1, %s11
    %p156 = scmp.lt.s32.totalorder %s11, 3
    %p157 = pnand %p155, %p156
    %p158 = pneg %p157
    // Predicated region
    $region9: #{cnn_classifier_head.1} parent=5 // pred_check
      _
    $region10: #{cnn_classifier_head.1} parent=5 // pred_check_branch
      %160 = sbr.rel (%p157) target = $region12
    $region11: #{cnn_classifier_head.1} parent=5 // pred_region
      %s161 = ssub.s32 %s11, 1
      // Predicated region
      $region13: #{cnn_classifier_head.1} parent=11 // pred_check
        %p162 = pneg %p58
      $region14: #{cnn_classifier_head.1} parent=11 // pred_check_branch
        %164 = sbr.rel (%p162) target = $region16
      $region15: #{cnn_classifier_head.1} parent=11 // pred_region
        _
      $region16: #{cnn_classifier_head.1} parent=11 // pred_fallthru
        _
      // Predicated region
      $region17: #{cnn_classifier_head.1} parent=11 // pred_check
        %p165 = pneg %p79
      $region18: #{cnn_classifier_head.1} parent=11 // pred_check_branch
        %167 = sbr.rel (%p165) target = $region20
      $region19: #{cnn_classifier_head.1} parent=11 // pred_region
        _
      $region20: #{cnn_classifier_head.1} parent=11 // pred_fallthru
        _
      // Predicated region
      $region21: #{cnn_classifier_head.1} parent=11 // pred_check
        %p168 = pneg %p100
      $region22: #{cnn_classifier_head.1} parent=11 // pred_check_branch
        %170 = sbr.rel (%p168) target = $region24
      $region23: #{cnn_classifier_head.1} parent=11 // pred_region
        _
      $region24: #{cnn_classifier_head.1} parent=11 // pred_fallthru
        _
      // Predicated region
      $region25: #{cnn_classifier_head.1} parent=11 // pred_check
        %p171 = pneg %p121
      $region26: #{cnn_classifier_head.1} parent=11 // pred_check_branch
        %173 = sbr.rel (%p171) target = $region28
      $region27: #{cnn_classifier_head.1} parent=11 // pred_region
        _
      $region28: #{cnn_classifier_head.1} parent=11 // pred_fallthru
        _
    $region12: #{cnn_classifier_head.1} parent=5 // pred_fallthru
      _
    %p174 = scmp.lt.s32.totalorder %s11, 2
    // Predicated region
    $region29: #{cnn_classifier_head.1} parent=5 // pred_check
      %p175 = pneg %p174
    $region30: #{cnn_classifier_head.1} parent=5 // pred_check_branch
      %177 = sbr.rel (%p175) target = $region32
    $region31: #{cnn_classifier_head.1} parent=5 // pred_region
      // Predicated region
      $region33: #{cnn_classifier_head.1} parent=31 // pred_check
        %p178 = pneg %p31
      $region34: #{cnn_classifier_head.1} parent=31 // pred_check_branch
        %180 = sbr.rel (%p178) target = $region36
      $region35: #{cnn_classifier_head.1} parent=31 // pred_region
        %p181 = scmp.lt.s32.totalorder %s11, 1
        %s182 = scalar_select %p181, %s11, 1
        %s183 = smul.addr %s182, 3
        %s184 = smul.addr %s183, 4
        %s185 = scalar_lea.vmem %s0, %s184
      $region36: #{cnn_classifier_head.1} parent=31 // pred_fallthru
        _
    $region32: #{cnn_classifier_head.1} parent=5 // pred_fallthru
      _
    %p186 = scmp.le.s32.totalorder 1, %s11
    %p187 = scmp.lt.s32.totalorder %s11, 3
    %p188 = pnand %p186, %p187
    %p189 = pneg %p188
    // Predicated region
    $region37: #{cnn_classifier_head.1} parent=5 // pred_check
      _
    $region38: #{cnn_classifier_head.1} parent=5 // pred_check_branch
      %191 = sbr.rel (%p188) target = $region40
    $region39: #{cnn_classifier_head.1} parent=5 // pred_region
      %s192 = ssub.s32 %s11, 1
      %p193 = scmp.lt.s32.totalorder %s16, 1
      %s194 = scalar_select %p193, %s16, 1
      %s195 = smul.addr %s194, 3
      %s196 = smul.addr %s195, 4
      %s197 = scalar_lea.vmem %s0, %s196
      %p198 = pneg %p37
      %p199 = pneg %p34
      %p200 = pneg %p58
      %p201 = pneg %p55
      %p202 = pneg %p79
      %p203 = pneg %p76
      %p204 = pneg %p100
      %p205 = pneg %p97
      %p206 = pneg %p121
      %p207 = pneg %p118
      %p208 = pneg %p147
      %p209 = pneg %p144
      %s210 = smul.u32 2, %s16
      %p211 = scmp.lt.s32.totalorder %s210, 3
      %s212 = scalar_select %p211, %s210, 3
      %s213 = smul.addr %s212, 4
      %s214 = scalar_lea.vmem %s5, %s213
      %p215 = scmp.lt.s32.totalorder %s16, 1
      %s216 = scalar_select %p215, %s16, 1
      %s217 = smul.addr %s216, 3
      %s218 = smul.addr %s217, 4
      %s219 = scalar_lea.vmem %s0, %s218
      %s220 = smul.u32 2, %s16
      %p221 = scmp.lt.s32.totalorder %s220, 3
      %s222 = scalar_select %p221, %s220, 3
      %s223 = smul.addr %s222, 4
      %s224 = scalar_lea.vmem %s5, %s223
      %s225 = smul.u32 2, %s16
      %v227 = vld [vmem:[%s219] sm:$0xf]
      %v228 = vld [vmem:[%s219 + $0x4] sm:$0xf]
      %v229 = vld [vmem:[%s219 + $0x8] sm:$0xf]
      %v230 = vld [vmem:[%s2] sm:$0x1]
      %v232 = vperm.slane %v230, 0
      %v234 = vld [vmem:[%s1] sm:$0xf]
      %v235 = vld [vmem:[%s1 + $0x4] sm:$0xf]
      %v236 = vld [vmem:[%s1 + $0x8] sm:$0xf]
      %v237 = vld [vmem:[%s1 + $0xc] sm:$0xf]
      %v241 = vunpack.c.l.b16 %v227
      %v242 = vunpack.c.l.b16 %v228
      %v243 = vunpack.c.l.b16 %v229
      %v244 = vpack.c.b16 %v242, %v241
      %v245 = vpack.c.b16 %v243, %v243
      %v250 = vunpack.c.l.b16 %v234
      %v251 = vunpack.c.l.b16 %v235
      %v252 = vunpack.c.l.b16 %v236
      %v253 = vunpack.c.l.b16 %v237
      %v254 = vpack.c.b16 %v251, %v250
      %v255 = vpack.c.b16 %v253, %v252
      %vm258 = vcmask 261120
      %v260 = vsel %vm258, %v244, 0
      %v263 = vsel %vm258, %v245, 0
      %265 = vmatpush.bf16.msra.mxu0 0
      %266 = vmatpush.bf16.msra.mxu0 0
      %267 = vmatpush.bf16.msra.mxu0 0
      %268 = vmatpush.bf16.msra.mxu0 0
      %269 = vmatpush.bf16.msra.mxu0 0
      %270 = vmatpush.bf16.msra.mxu0 0
      %271 = vmatpush.bf16.msra.mxu0 %v255
      %272 = vmatpush.bf16.msra.mxu0 %v254
      %273 = vmatmul.bf16.gmra.mxu0 %v260
      %v274 = vpop.f32.mrf.mxu0
      %v275 = vadd.f32 0.0, %v274
      %v276 = vpop.f32.mrf.mxu0
      %v277 = vadd.f32 0.0, %v276
      %278 = vmatmul.bf16.gmra.mxu0 %v263
      %v279 = vpop.f32.mrf.mxu0
      %v280 = vpop.f32.mrf.mxu0
      %281 = vdwg.mxu0
      %v282 = vadd.f32 %v232, %v275
      %v283 = vadd.f32 %v232, %v277
      %s284 = scalar_lea.vmem %s1, 16
      %v285 = vld [vmem:[%s284] sm:$0xf]
      %v286 = vld [vmem:[%s284 + $0x4] sm:$0xf]
      %v287 = vld [vmem:[%s284 + $0x8] sm:$0xf]
      %v288 = vld [vmem:[%s284 + $0xc] sm:$0xf]
      %v293 = vunpack.c.l.b16 %v285
      %v294 = vunpack.c.l.b16 %v286
      %v295 = vunpack.c.l.b16 %v287
      %v296 = vunpack.c.l.b16 %v288
      %v297 = vpack.c.b16 %v294, %v293
      %v298 = vpack.c.b16 %v296, %v295
      %301 = vmatpush.bf16.msra.mxu0 0
      %302 = vmatpush.bf16.msra.mxu0 0
      %303 = vmatpush.bf16.msra.mxu0 0
      %304 = vmatpush.bf16.msra.mxu0 0
      %305 = vmatpush.bf16.msra.mxu0 0
      %306 = vmatpush.bf16.msra.mxu0 0
      %307 = vmatpush.bf16.msra.mxu0 %v298
      %308 = vmatpush.bf16.msra.mxu0 %v297
      %309 = vmatmul.bf16.gmra.mxu0 %v260
      %v310 = vpop.f32.mrf.mxu0
      %v311 = vadd.f32 0.0, %v310
      %v312 = vpop.f32.mrf.mxu0
      %v313 = vadd.f32 0.0, %v312
      %314 = vmatmul.bf16.gmra.mxu0 %v263
      %v315 = vpop.f32.mrf.mxu0
      %v316 = vadd.f32 0.0, %v315
      %v317 = vpop.f32.mrf.mxu0
      %318 = vdwg.mxu0
      %vm322 = vcmask 1046528
      %v323 = vrot.slane %v311, 1
      %v324 = vrot.slane %v313, 1
      %v325 = vsel %vm322, %v323, %v324
      %v326 = vrot.slane %v316, 1
      %v327 = vsel %vm322, %v324, %v326
      %v330 = vadd.f32 %v282, %v325
      %v331 = vadd.f32 %v283, %v327
      %s332 = scalar_lea.vmem %s1, 32
      %v333 = vld [vmem:[%s332] sm:$0xf]
      %v334 = vld [vmem:[%s332 + $0x4] sm:$0xf]
      %v335 = vld [vmem:[%s332 + $0x8] sm:$0xf]
      %v336 = vld [vmem:[%s332 + $0xc] sm:$0xf]
      %v341 = vunpack.c.l.b16 %v333
      %v342 = vunpack.c.l.b16 %v334
      %v343 = vunpack.c.l.b16 %v335
      %v344 = vunpack.c.l.b16 %v336
      %v345 = vpack.c.b16 %v342, %v341
      %v346 = vpack.c.b16 %v344, %v343
      %349 = vmatpush.bf16.msra.mxu0 0
      %350 = vmatpush.bf16.msra.mxu0 0
      %351 = vmatpush.bf16.msra.mxu0 0
      %352 = vmatpush.bf16.msra.mxu0 0
      %353 = vmatpush.bf16.msra.mxu0 0
      %354 = vmatpush.bf16.msra.mxu0 0
      %355 = vmatpush.bf16.msra.mxu0 %v346
      %356 = vmatpush.bf16.msra.mxu0 %v345
      %357 = vmatmul.bf16.gmra.mxu0 %v260
      %v358 = vpop.f32.mrf.mxu0
      %v359 = vadd.f32 0.0, %v358
      %v360 = vpop.f32.mrf.mxu0
      %v361 = vadd.f32 0.0, %v360
      %362 = vmatmul.bf16.gmra.mxu0 %v263
      %v363 = vpop.f32.mrf.mxu0
      %v364 = vadd.f32 0.0, %v363
      %v365 = vpop.f32.mrf.mxu0
      %366 = vdwg.mxu0
      %vm370 = vcmask 1045504
      %v371 = vrot.slane %v359, 2
      %v372 = vrot.slane %v361, 2
      %v373 = vsel %vm370, %v371, %v372
      %v374 = vrot.slane %v364, 2
      %v375 = vsel %vm370, %v372, %v374
      %v378 = vadd.f32 %v330, %v373
      %v379 = vadd.f32 %v331, %v375
      %s380 = scalar_lea.vmem %s1, 48
      %v381 = vld [vmem:[%s380] sm:$0xf]
      %v382 = vld [vmem:[%s380 + $0x4] sm:$0xf]
      %v383 = vld [vmem:[%s380 + $0x8] sm:$0xf]
      %v384 = vld [vmem:[%s380 + $0xc] sm:$0xf]
      %v389 = vunpack.c.l.b16 %v381
      %v390 = vunpack.c.l.b16 %v382
      %v391 = vunpack.c.l.b16 %v383
      %v392 = vunpack.c.l.b16 %v384
      %v393 = vpack.c.b16 %v390, %v389
      %v394 = vpack.c.b16 %v392, %v391
      %397 = vmatpush.bf16.msra.mxu0 0
      %398 = vmatpush.bf16.msra.mxu0 0
      %399 = vmatpush.bf16.msra.mxu0 0
      %400 = vmatpush.bf16.msra.mxu0 0
      %401 = vmatpush.bf16.msra.mxu0 0
      %402 = vmatpush.bf16.msra.mxu0 0
      %403 = vmatpush.bf16.msra.mxu0 %v394
      %404 = vmatpush.bf16.msra.mxu0 %v393
      %405 = vmatmul.bf16.gmra.mxu0 %v260
      %v406 = vpop.f32.mrf.mxu0
      %v407 = vadd.f32 0.0, %v406
      %v408 = vpop.f32.mrf.mxu0
      %v409 = vadd.f32 0.0, %v408
      %410 = vmatmul.bf16.gmra.mxu0 %v263
      %v411 = vpop.f32.mrf.mxu0
      %v412 = vadd.f32 0.0, %v411
      %v413 = vpop.f32.mrf.mxu0
      %414 = vdwg.mxu0
      %vm418 = vcmask 1044480
      %v419 = vrot.slane %v407, 3
      %v420 = vrot.slane %v409, 3
      %v421 = vsel %vm418, %v419, %v420
      %v422 = vrot.slane %v412, 3
      %v423 = vsel %vm418, %v420, %v422
      %v426 = vadd.f32 %v378, %v421
      %v427 = vadd.f32 %v379, %v423
      %s428 = scalar_lea.vmem %s1, 64
      %v429 = vld [vmem:[%s428] sm:$0xf]
      %v430 = vld [vmem:[%s428 + $0x4] sm:$0xf]
      %v431 = vld [vmem:[%s428 + $0x8] sm:$0xf]
      %v432 = vld [vmem:[%s428 + $0xc] sm:$0xf]
      %v437 = vunpack.c.l.b16 %v429
      %v438 = vunpack.c.l.b16 %v430
      %v439 = vunpack.c.l.b16 %v431
      %v440 = vunpack.c.l.b16 %v432
      %v441 = vpack.c.b16 %v438, %v437
      %v442 = vpack.c.b16 %v440, %v439
      %445 = vmatpush.bf16.msra.mxu0 0
      %446 = vmatpush.bf16.msra.mxu0 0
      %447 = vmatpush.bf16.msra.mxu0 0
      %448 = vmatpush.bf16.msra.mxu0 0
      %449 = vmatpush.bf16.msra.mxu0 0
      %450 = vmatpush.bf16.msra.mxu0 0
      %451 = vmatpush.bf16.msra.mxu0 %v442
      %452 = vmatpush.bf16.msra.mxu0 %v441
      %453 = vmatmul.bf16.gmra.mxu0 %v260
      %v454 = vpop.f32.mrf.mxu0
      %v455 = vadd.f32 0.0, %v454
      %v456 = vpop.f32.mrf.mxu0
      %v457 = vadd.f32 0.0, %v456
      %458 = vmatmul.bf16.gmra.mxu0 %v263
      %v459 = vpop.f32.mrf.mxu0
      %v460 = vadd.f32 0.0, %v459
      %v461 = vpop.f32.mrf.mxu0
      %462 = vdwg.mxu0
      %vm466 = vcmask 1043456
      %v467 = vrot.slane %v455, 4
      %v468 = vrot.slane %v457, 4
      %v469 = vsel %vm466, %v467, %v468
      %v470 = vrot.slane %v460, 4
      %v471 = vsel %vm466, %v468, %v470
      %v474 = vadd.f32 %v426, %v469
      %v475 = vadd.f32 %v427, %v471
      %s476 = scalar_lea.vmem %s1, 80
      %v477 = vld [vmem:[%s476] sm:$0xf]
      %v478 = vld [vmem:[%s476 + $0x4] sm:$0xf]
      %v479 = vld [vmem:[%s476 + $0x8] sm:$0xf]
      %v480 = vld [vmem:[%s476 + $0xc] sm:$0xf]
      %v485 = vunpack.c.l.b16 %v477
      %v486 = vunpack.c.l.b16 %v478
      %v487 = vunpack.c.l.b16 %v479
      %v488 = vunpack.c.l.b16 %v480
      %v489 = vpack.c.b16 %v486, %v485
      %v490 = vpack.c.b16 %v488, %v487
      %493 = vmatpush.bf16.msra.mxu0 0
      %494 = vmatpush.bf16.msra.mxu0 0
      %495 = vmatpush.bf16.msra.mxu0 0
      %496 = vmatpush.bf16.msra.mxu0 0
      %497 = vmatpush.bf16.msra.mxu0 0
      %498 = vmatpush.bf16.msra.mxu0 0
      %499 = vmatpush.bf16.msra.mxu0 %v490
      %500 = vmatpush.bf16.msra.mxu0 %v489
      %501 = vmatmul.bf16.gmra.mxu0 %v260
      %v502 = vpop.f32.mrf.mxu0
      %v503 = vadd.f32 0.0, %v502
      %v504 = vpop.f32.mrf.mxu0
      %v505 = vadd.f32 0.0, %v504
      %506 = vmatmul.bf16.gmra.mxu0 %v263
      %v507 = vpop.f32.mrf.mxu0
      %v508 = vadd.f32 0.0, %v507
      %v509 = vpop.f32.mrf.mxu0
      %510 = vdwg.mxu0
      %vm514 = vcmask 1042432
      %v515 = vrot.slane %v503, 5
      %v516 = vrot.slane %v505, 5
      %v517 = vsel %vm514, %v515, %v516
      %v518 = vrot.slane %v508, 5
      %v519 = vsel %vm514, %v516, %v518
      %v522 = vadd.f32 %v474, %v517
      %v523 = vadd.f32 %v475, %v519
      %s524 = scalar_lea.vmem %s1, 96
      %v525 = vld [vmem:[%s524] sm:$0xf]
      %v526 = vld [vmem:[%s524 + $0x4] sm:$0xf]
      %v527 = vld [vmem:[%s524 + $0x8] sm:$0xf]
      %v528 = vld [vmem:[%s524 + $0xc] sm:$0xf]
      %v533 = vunpack.c.l.b16 %v525
      %v534 = vunpack.c.l.b16 %v526
      %v535 = vunpack.c.l.b16 %v527
      %v536 = vunpack.c.l.b16 %v528
      %v537 = vpack.c.b16 %v534, %v533
      %v538 = vpack.c.b16 %v536, %v535
      %541 = vmatpush.bf16.msra.mxu0 0
      %542 = vmatpush.bf16.msra.mxu0 0
      %543 = vmatpush.bf16.msra.mxu0 0
      %544 = vmatpush.bf16.msra.mxu0 0
      %545 = vmatpush.bf16.msra.mxu0 0
      %546 = vmatpush.bf16.msra.mxu0 0
      %547 = vmatpush.bf16.msra.mxu0 %v538
      %548 = vmatpush.bf16.msra.mxu0 %v537
      %549 = vmatmul.bf16.gmra.mxu0 %v260
      %v550 = vpop.f32.mrf.mxu0
      %v551 = vadd.f32 0.0, %v550
      %v552 = vpop.f32.mrf.mxu0
      %v553 = vadd.f32 0.0, %v552
      %554 = vmatmul.bf16.gmra.mxu0 %v263
      %v555 = vpop.f32.mrf.mxu0
      %v556 = vadd.f32 0.0, %v555
      %v557 = vpop.f32.mrf.mxu0
      %558 = vdwg.mxu0
      %vm562 = vcmask 1041408
      %v563 = vrot.slane %v551, 6
      %v564 = vrot.slane %v553, 6
      %v565 = vsel %vm562, %v563, %v564
      %v566 = vrot.slane %v556, 6
      %v567 = vsel %vm562, %v564, %v566
      %v570 = vadd.f32 %v522, %v565
      %v571 = vadd.f32 %v523, %v567
      %v572 = vmax.f32 %v570, 0.0
      %v573 = vmax.f32 %v571, 0.0
      %v574 = vpack.c.bf16 %v573, %v572
      %v575 = vld [vmem:[%s3] sm:$0xf]
      %v576 = vld [vmem:[%s3 + $0x4] sm:$0xf]
      %v577 = vld [vmem:[%s3 + $0x8] sm:$0xf]
      %v578 = vld [vmem:[%s3 + $0xc] sm:$0xf]
      %v579 = vld [vmem:[%s4] sm:$0x1]
      %v581 = vperm.slane %v579, 0
      %v587 = vunpack.c.l.b16 %v575
      %v588 = vunpack.c.l.b16 %v576
      %v589 = vunpack.c.l.b16 %v577
      %v590 = vunpack.c.l.b16 %v578
      %v591 = vpack.c.b16 %v588, %v587
      %v592 = vpack.c.b16 %v590, %v589
      %v596 = vsel %vm258, %v574, 0
      %598 = vmatpush.bf16.msra.mxu0 0
      %599 = vmatpush.bf16.msra.mxu0 0
      %600 = vmatpush.bf16.msra.mxu0 0
      %601 = vmatpush.bf16.msra.mxu0 0
      %602 = vmatpush.bf16.msra.mxu0 0
      %603 = vmatpush.bf16.msra.mxu0 0
      %604 = vmatpush.bf16.msra.mxu0 %v592
      %605 = vmatpush.bf16.msra.mxu0 %v591
      %606 = vmatmul.bf16.gmra.mxu0 %v596
      %v607 = vpop.f32.mrf.mxu0
      %v608 = vadd.f32 %v581, %v607
      %v609 = vpop.f32.mrf.mxu0
      %v610 = vadd.f32 %v581, %v609
      %611 = vdwg.mxu0
      %v612 = vpack.c.bf16 %v608, %v608
      %v613 = vpack.c.bf16 %v610, %v610
      %614 = vst [vmem:[%s224] sm:$0xf] %v612
      %615 = vst [vmem:[%s224 + $0x4] sm:$0xf] %v613
      %s616 = smul.u32 2, %s16
      %p617 = scmp.lt.s32.totalorder %s616, 3
      %s618 = scalar_select %p617, %s616, 3
      %s619 = smul.addr %s618, 4
      %s620 = scalar_lea.vmem %s5, %s619
      // Predicated region
      $region41: #{cnn_classifier_head.1} parent=39 // pred_check
        %p621 = pneg %p144
      $region42: #{cnn_classifier_head.1} parent=39 // pred_check_branch
        %623 = sbr.rel (%p621) target = $region44
      $region43: #{cnn_classifier_head.1} parent=39 // pred_region
        %s624 = smul.u32 2, %s16
      $region44: #{cnn_classifier_head.1} parent=39 // pred_fallthru
        _
    $region40: #{cnn_classifier_head.1} parent=5 // pred_fallthru
      _
    %p625 = scmp.le.s32.totalorder 2, %s11
    // Predicated region
    $region45: #{cnn_classifier_head.1} parent=5 // pred_check
      %p626 = pneg %p625
    $region46: #{cnn_classifier_head.1} parent=5 // pred_check_branch
      %628 = sbr.rel (%p626) target = $region48
    $region47: #{cnn_classifier_head.1} parent=5 // pred_region
      %s629 = ssub.s32 %s11, 2
      // Predicated region
      $region49: #{cnn_classifier_head.1} parent=47 // pred_check
        %p630 = pneg %p150
      $region50: #{cnn_classifier_head.1} parent=47 // pred_check_branch
        %632 = sbr.rel (%p630) target = $region52
      $region51: #{cnn_classifier_head.1} parent=47 // pred_region
        %s633 = smul.u32 2, %s17
        %p634 = scmp.lt.s32.totalorder %s633, 3
        %s635 = scalar_select %p634, %s633, 3
        %s636 = smul.addr %s635, 4
        %s637 = scalar_lea.vmem %s5, %s636
      $region52: #{cnn_classifier_head.1} parent=47 // pred_fallthru
        _
    $region48: #{cnn_classifier_head.1} parent=5 // pred_fallthru
      _
  $region6: #{cnn_classifier_head.1} parent=0 // loop_footer
    %s15 = sadd.s32 1, %s11
  $region7: #{cnn_classifier_head.1} parent=0 // loop_footer_branch
    %10 = sbr.rel target = $region3
  $region8: #{cnn_classifier_head.1} parent=0 // loop_exit
    _

</llo_original>
